<compile_context>
chip_gen: v6e
topology: v6e:2x2x1
jax: 0.10.0
libtpu: 0.0.40
codegen_flags: <defaults>
</compile_context>

<pallas_src>
import functools

import jax
import jax.numpy as jnp
import numpy as np
from jax.experimental import pallas as pl
from jax.experimental.pallas import tpu as pltpu

# ---- model hyper-parameters (small, consistent with the module) ----
VOCAB = 50            # embed_size
EMBED_DIM = 32        # stands in for 300 (small test size)
SEQ_LEN = 8
WINDOW_SIZES = (2, 3, 4)
MAX_H = max(WINDOW_SIZES)
FILTER_CHANNELS = 256
C3 = FILTER_CHANNELS * len(WINDOW_SIZES)   # 768 packed conv channels
WORK_GOAL = 4
BATCH = 2

K_PAD = 128           # fused im2col contraction dim (MAX_H*E) padded to MXU-friendly K
G_PAD = 128           # logits lane-padded to 128 lanes (lane-dense output store)
T_PAD = 8             # conv time positions padded up to one full sublane tile


def textcnn_kernel(p_ref,       # (B*T_PAD, K_PAD)  bf16 fused im2col patches
                   wconv_ref,   # (K_PAD, 3C)       bf16 packed conv weights (w2|w3|w4)
                   bconv_ref,   # (1, 3C)           f32  packed conv biases
                   mask_ref,    # (T_PAD, 3C)       f32  per-window valid-time mask (1/0)
                   wfc_ref,     # (3C, G_PAD)       bf16 packed fc weight
                   bfc_ref,     # (1, G_PAD)        f32  fc bias
                   out_ref,     # (B, G_PAD)        f32  logits slab
                   *, batch):
    c3 = wconv_ref.shape[-1]
    t_pad = p_ref.shape[0] // batch
    # All three conv windows as ONE matmul (K-prefix trick): smaller-window weight
    # columns are zero beyond their taps and the sequence tail was zero-padded, so
    # (B*T,128)@(128,768) reproduces each per-window Conv1d exactly.
    conv = jnp.dot(p_ref[...], wconv_ref[...], preferred_element_type=jnp.float32)
    conv = jnp.maximum(conv + bconv_ref[...], 0.0)                 # bias + ReLU (f32)
    # Global max-pool over time.  Invalid / zero-padded time rows are multiplied to 0,
    # which is exact because the true max of ReLU outputs is always >= 0.
    conv3 = conv.reshape(batch, t_pad, c3)                         # clean 8-sublane split
    pooled = jnp.max(conv3 * mask_ref[...], axis=1)                # (B, 3C)
    # FC: single (B, 3C) @ (3C, G_PAD) matmul; channel order matches torch.cat(dim=1).
    logits = jnp.dot(pooled.astype(wfc_ref.dtype), wfc_ref[...],
                     preferred_element_type=jnp.float32)
    out_ref[...] = logits + bfc_ref[...]                           # single lane-dense store
    # NOTE: nn.Dropout(0.5) is declared in the module but never applied in forward(),
    # so it is intentionally omitted here.


def _im2col_fused(x_emb):
    """(B, L, E) -> (B*T_PAD, K_PAD) bf16 patches from the largest window (h=MAX_H).

    The sequence is zero-padded by MAX_H-1 steps so out-of-range taps read zeros; the
    packed weight's zero K rows then keep every window's conv exact.
    """
    B, L, E = x_emb.shape
    x_pad = jnp.pad(x_emb, ((0, 0), (0, MAX_H - 1), (0, 0)))
    idx = jnp.arange(T_PAD)[:, None] + jnp.arange(MAX_H)[None, :]   # (T_PAD, MAX_H)
    p = x_pad[:, idx, :].reshape(B, T_PAD, MAX_H * E)               # tap-major K layout
    if MAX_H * E < K_PAD:
        p = jnp.pad(p, ((0, 0), (0, 0), (0, K_PAD - MAX_H * E)))
    return p.reshape(B * T_PAD, K_PAD).astype(jnp.bfloat16)


@jax.jit
def textcnn_forward(x_emb, params):
    """x_emb: (B, L, E) float32 embedded tokens; returns (B, G) float32 logits."""
    B = x_emb.shape[0]
    G = params["bfc"].shape[-1]

    patches = _im2col_fused(x_emb)
    args = (patches, params["wconv"], params["bconv"], params["mask"],
            params["wfc_pad"], params["bfc_pad"])

    vmem = pl.BlockSpec(memory_space=pltpu.MemorySpace.VMEM)
    kernel = functools.partial(textcnn_kernel, batch=B)
    out = pl.pallas_call(
        kernel,
        out_shape=jax.ShapeDtypeStruct((B, G_PAD), jnp.float32),
        in_specs=[vmem] * len(args),
        out_specs=vmem,
    )(*args)
    return out[:, :G]


def make_params(key):
    """Deterministic synthetic parameters matching the nn.Module shapes."""
    ks = jax.random.split(key, 12)
    C = FILTER_CHANNELS
    emb = jax.random.normal(ks[0], (VOCAB, EMBED_DIM), jnp.float32) * 0.1
    emb = emb.at[VOCAB - 1].set(0.0)                                # padding_idx
    params = {"embedding": emb}

    wconv_blocks, bconv_blocks = [], []
    for i, h in enumerate(WINDOW_SIZES):
        w_torch = jax.random.normal(ks[1 + 2 * i], (C, EMBED_DIM, h), jnp.float32) * 0.05
        b = jax.random.normal(ks[2 + 2 * i], (C,), jnp.float32) * 0.05
        # torch Conv1d weight (C, E, h) -> im2col matrix (h*E, C), K zero-padded to K_PAD.
        w_flat = jnp.transpose(w_torch, (2, 1, 0)).reshape(h * EMBED_DIM, C)
        w_flat = jnp.pad(w_flat, ((0, K_PAD - h * EMBED_DIM), (0, 0)))
        wconv_blocks.append(w_flat)
        bconv_blocks.append(b)
        params[f"w{h}_torch"] = w_torch
        params[f"b{h}"] = b.reshape(1, C)
    # One packed conv weight / bias: channel order (w2 | w3 | w4) == torch.cat(dim=1).
    params["wconv"] = jnp.concatenate(wconv_blocks, axis=-1).astype(jnp.bfloat16)  # (128, 768)
    params["bconv"] = jnp.concatenate(bconv_blocks, axis=-1).reshape(1, C3)        # (1, 768)

    # Per-window valid-time mask for the shared T_PAD time grid (1.0 where t < l_out).
    mask = np.zeros((T_PAD, C3), np.float32)
    for i, h in enumerate(WINDOW_SIZES):
        l_out = SEQ_LEN - h + 1
        mask[:l_out, i * C:(i + 1) * C] = 1.0
    params["mask"] = jnp.asarray(mask)

    # fc: torch Linear weight (G, 3C); use its transpose, lane-padded to G_PAD.
    wfc_torch = jax.random.normal(ks[9], (WORK_GOAL, C3), jnp.float32) * 0.05
    bfc = jax.random.normal(ks[10], (WORK_GOAL,), jnp.float32) * 0.05
    wfc_t = wfc_torch.T                                             # (3C, G)
    params["wfc_pad"] = jnp.pad(wfc_t, ((0, 0), (0, G_PAD - WORK_GOAL))).astype(jnp.bfloat16)
    params["bfc"] = bfc.reshape(1, WORK_GOAL)
    params["bfc_pad"] = jnp.pad(params["bfc"], ((0, 0), (0, G_PAD - WORK_GOAL)))
    params["wfc"] = wfc_t
    params["wfc_torch"] = wfc_torch
    return params


def reference_forward(tokens, params):
    """Pure-JAX float32 reference reproducing the PyTorch forward exactly (NCW conv)."""
    x = params["embedding"][tokens]            # (B, L, E)
    x = jnp.transpose(x, (0, 2, 1))            # (B, E, L)  == permute(0, 2, 1)
    feats = []
    for h in WINDOW_SIZES:
        w = params[f"w{h}_torch"]              # (C, E, h)
        b = params[f"b{h}"][0]                 # (C,)
        l_out = SEQ_LEN - h + 1
        outs = []
        for t in range(l_out):
            patch = x[:, :, t:t + h]           # (B, E, h)
            outs.append(jnp.einsum("beh,ceh->bc", patch, w) + b)
        conv = jnp.stack(outs, axis=-1)        # (B, C, L_out)
        conv = jnp.maximum(conv, 0.0)
        feats.append(jnp.max(conv, axis=-1))   # (B, C)
    f = jnp.concatenate(feats, axis=-1)        # (B, 3C)
    return f @ params["wfc"] + params["bfc"][0]


if __name__ == "__main__":
    key = jax.random.PRNGKey(0)
    k_tok, k_par = jax.random.split(key)
    params = make_params(k_par)

    tokens = jax.random.randint(k_tok, (BATCH, SEQ_LEN), 0, VOCAB, dtype=jnp.int32)
    x_emb = params["embedding"][tokens]        # embedding gather (glue, plain JAX)

    out = textcnn_forward(x_emb, params)
    out = jax.block_until_ready(out)

    ref = reference_forward(tokens, params)
    # Tolerance widened vs a pure-f32 version because matmul operands are bf16
    # (accumulation is still f32); observed error ~1e-3 on logits of magnitude ~1e-1.
    np.testing.assert_allclose(np.asarray(out), np.asarray(ref), rtol=2e-2, atol=2e-2)
    print("KERNEL_OK")
</pallas_src>

<mosaic_0001>
module attributes {stable_mosaic.version = 11 : i64} {
  func.func @textcnn_kernel(%arg0: memref<16x128xbf16, #tpu.memory_space<vmem>>, %arg1: memref<128x768xbf16, #tpu.memory_space<vmem>>, %arg2: memref<1x768xf32, #tpu.memory_space<vmem>>, %arg3: memref<8x768xf32, #tpu.memory_space<vmem>>, %arg4: memref<768x128xbf16, #tpu.memory_space<vmem>>, %arg5: memref<1x128xf32, #tpu.memory_space<vmem>>, %arg6: memref<2x128xf32, #tpu.memory_space<vmem>>) attributes {dimension_semantics = [], scalar_prefetch = 0 : i64, scratch_operands = 0 : i64, tpu.core_type = #tpu.core_type<tc>} {
    %c0 = arith.constant 0 : index
    %c0_0 = arith.constant 0 : index
    %0 = vector.load %arg0[%c0, %c0_0] : memref<16x128xbf16, #tpu.memory_space<vmem>>, vector<16x128xbf16>
    %c0_1 = arith.constant 0 : index
    %c0_2 = arith.constant 0 : index
    %1 = vector.load %arg1[%c0_1, %c0_2] : memref<128x768xbf16, #tpu.memory_space<vmem>>, vector<128x768xbf16>
    %cst = arith.constant dense<0.000000e+00> : vector<16x768xf32>
    %2 = tpu.matmul %0, %1, %cst {dimension_numbers = #tpu.dot_dimension_numbers<[1], [0], [0], [1], [0, 0, 1, 1], [], []>} : vector<16x128xbf16>, vector<128x768xbf16>, vector<16x768xf32> -> vector<16x768xf32>
    %c0_3 = arith.constant 0 : index
    %c0_4 = arith.constant 0 : index
    %3 = vector.load %arg2[%c0_3, %c0_4] : memref<1x768xf32, #tpu.memory_space<vmem>>, vector<1x768xf32>
    %4 = vector.broadcast %3 : vector<1x768xf32> to vector<16x768xf32>
    %5 = arith.addf %2, %4 : vector<16x768xf32>
    %cst_5 = arith.constant 0.000000e+00 : f32
    %6 = vector.broadcast %cst_5 : f32 to vector<16x768xf32>
    %7 = arith.maximumf %5, %6 : vector<16x768xf32>
    %8 = vector.shape_cast %7 : vector<16x768xf32> to vector<2x8x768xf32>
    %c0_6 = arith.constant 0 : index
    %c0_7 = arith.constant 0 : index
    %9 = vector.load %arg3[%c0_6, %c0_7] : memref<8x768xf32, #tpu.memory_space<vmem>>, vector<8x768xf32>
    %10 = vector.shape_cast %9 : vector<8x768xf32> to vector<1x8x768xf32>
    %11 = vector.broadcast %10 : vector<1x8x768xf32> to vector<2x8x768xf32>
    %12 = arith.mulf %8, %11 : vector<2x8x768xf32>
    %cst_8 = arith.constant dense<0xFF800000> : vector<2x768xf32>
    %13 = vector.multi_reduction <maximumf>, %12, %cst_8 [1] : vector<2x8x768xf32> to vector<2x768xf32>
    %14 = arith.truncf %13 : vector<2x768xf32> to vector<2x768xbf16>
    %c0_9 = arith.constant 0 : index
    %c0_10 = arith.constant 0 : index
    %15 = vector.load %arg4[%c0_9, %c0_10] : memref<768x128xbf16, #tpu.memory_space<vmem>>, vector<768x128xbf16>
    %cst_11 = arith.constant dense<0.000000e+00> : vector<2x128xf32>
    %16 = tpu.matmul %14, %15, %cst_11 {dimension_numbers = #tpu.dot_dimension_numbers<[1], [0], [0], [1], [0, 0, 1, 1], [], []>} : vector<2x768xbf16>, vector<768x128xbf16>, vector<2x128xf32> -> vector<2x128xf32>
    %c0_12 = arith.constant 0 : index
    %c0_13 = arith.constant 0 : index
    %17 = vector.load %arg5[%c0_12, %c0_13] : memref<1x128xf32, #tpu.memory_space<vmem>>, vector<1x128xf32>
    %18 = vector.broadcast %17 : vector<1x128xf32> to vector<2x128xf32>
    %19 = arith.addf %16, %18 : vector<2x128xf32>
    %c0_14 = arith.constant 0 : index
    %c0_15 = arith.constant 0 : index
    %20 = vector.load %arg6[%c0_14, %c0_15] : memref<2x128xf32, #tpu.memory_space<vmem>>, vector<2x128xf32>
    tpu.vector_store %arg6[%c0_14, %c0_15], %19 {strides = array<i32>} : memref<2x128xf32, #tpu.memory_space<vmem>>, vector<2x128xf32>,
    return
  }
}

</mosaic_0001>

<llo_original>
// kernel: textcnn_forward.1
$region0: #{textcnn_forward.1}
  #allocation0 [shape = 'u32[]', space=smem, size = 0x4, offset = 0x4, fixed_abs, tag = 'smem constant byte address 0x4 - core index']
  #allocation1 [shape = 'u32[144,128]{1,0:T(1,128)}', space=vmem, size = 0x12000, scoped, tag = 'internal scratch']
  %s0 = inlined_call_operand.vmem [shape: bf16[16,128], index: 0, kind: input, shape index: {}]
  %s1 = inlined_call_operand.hbm [shape: bf16[128,768], index: 1, kind: input, shape index: {}]
  %s2 = inlined_call_operand.vmem [shape: f32[1,768], index: 2, kind: input, shape index: {}]
  %s3 = inlined_call_operand.vmem [shape: f32[8,768], index: 3, kind: input, shape index: {}]
  %s4 = inlined_call_operand.hbm [shape: bf16[768,128], index: 4, kind: input, shape index: {}]
  %s5 = inlined_call_operand.vmem [shape: f32[1,128], index: 5, kind: input, shape index: {}]
  %s6 = inlined_call_operand.hbm [shape: f32[2,128], index: 6, kind: output, shape index: {}]
  %s7 = sld [smem:[#allocation0]]
  $region42: #{textcnn_forward.1} parent=0
    _
  %s9 = ssub.s32 1, %s7
  %s10 = scalar_select 0, %s9, %s7
  $region1: #{textcnn_forward.1} parent=0
    #allocation2 [shape = 'u8[196608]{0}', space=vmem, size = 0x30000, scoped, tag = 'input window, operand 1, single buffered']
    #allocation3 [shape = 's32[1]{0}', space=sflag, size = 0x4, scoped, tag = 'scoped memory for textcnn_forward.1']
    #allocation4 [shape = 's32[1]{0}', space=sflag, size = 0x4, scoped, tag = 'scoped memory for textcnn_forward.1']
    #allocation5 [shape = 'u8[196608]{0}', space=vmem, size = 0x30000, scoped, tag = 'input window, operand 4, single buffered']
    #allocation6 [shape = 's32[1]{0}', space=sflag, size = 0x4, scoped, tag = 'scoped memory for textcnn_forward.1']
    #allocation7 [shape = 'u8[1024]{0}', space=vmem, size = 0x400, scoped, tag = 'output window, operand 0, single buffered']
    %11 = vsyncpa [#allocation3], 0
    %12 = vsyncpa [#allocation6], 0
    %13 = vsyncpa [#allocation4], 0
    // Predicated region
    $region2: #{textcnn_forward.1} parent=1 // pred_check
      _
    $region3: #{textcnn_forward.1} parent=1 // pred_check_branch
      %15 = sbr.rel (0) target = $region5
    $region4: #{textcnn_forward.1} parent=1 // pred_region
      _
    $region5: #{textcnn_forward.1} parent=1 // pred_fallthru
      _
    // Predicated region
    $region6: #{textcnn_forward.1} parent=1 // pred_check
      _
    $region7: #{textcnn_forward.1} parent=1 // pred_check_branch
      %17 = sbr.rel (0) target = $region9
    $region8: #{textcnn_forward.1} parent=1 // pred_region
      %s19 = ssub.s32 6144, 6144
      %20 = vsyncadd [#allocation3], %s19
      %s21 = sshll.u32 [#allocation2], 4
      %s22 = int_to_ptr.vmem [resolvable:$true] %s21
      %27 = dma.hbm_to_vmem [thread:$0]  %s1, 6144, %s22, [#allocation3], 384, 384, 24
    $region9: #{textcnn_forward.1} parent=1 // pred_fallthru
      _
    // Predicated region
    $region10: #{textcnn_forward.1} parent=1 // pred_check
      _
    $region11: #{textcnn_forward.1} parent=1 // pred_check_branch
      %29 = sbr.rel (0) target = $region13
    $region12: #{textcnn_forward.1} parent=1 // pred_region
      _
    $region13: #{textcnn_forward.1} parent=1 // pred_fallthru
      _
    // Predicated region
    $region14: #{textcnn_forward.1} parent=1 // pred_check
      _
    $region15: #{textcnn_forward.1} parent=1 // pred_check_branch
      %31 = sbr.rel (0) target = $region17
    $region16: #{textcnn_forward.1} parent=1 // pred_region
      _
    $region17: #{textcnn_forward.1} parent=1 // pred_fallthru
      _
    // Predicated region
    $region18: #{textcnn_forward.1} parent=1 // pred_check
      _
    $region19: #{textcnn_forward.1} parent=1 // pred_check_branch
      %33 = sbr.rel (0) target = $region21
    $region20: #{textcnn_forward.1} parent=1 // pred_region
      %s35 = ssub.s32 6144, 6144
      %36 = vsyncadd [#allocation6], %s35
      %s37 = sshll.u32 [#allocation5], 4
      %s38 = int_to_ptr.vmem [resolvable:$true] %s37
      %43 = dma.hbm_to_vmem [thread:$0]  %s4, 6144, %s38, [#allocation6], 64, 64, 4
    $region21: #{textcnn_forward.1} parent=1 // pred_fallthru
      _
    // Predicated region
    $region22: #{textcnn_forward.1} parent=1 // pred_check
      _
    $region23: #{textcnn_forward.1} parent=1 // pred_check_branch
      %45 = sbr.rel (0) target = $region25
    $region24: #{textcnn_forward.1} parent=1 // pred_region
      _
    $region25: #{textcnn_forward.1} parent=1 // pred_fallthru
      _
    // Predicated region
    $region26: #{textcnn_forward.1} parent=1 // pred_check
      _
    $region27: #{textcnn_forward.1} parent=1 // pred_check_branch
      %47 = sbr.rel (0) target = $region29
    $region28: #{textcnn_forward.1} parent=1 // pred_region
      %48 = dma.done [#allocation3], 6144
    $region29: #{textcnn_forward.1} parent=1 // pred_fallthru
      _
    // Predicated region
    $region30: #{textcnn_forward.1} parent=1 // pred_check
      _
    $region31: #{textcnn_forward.1} parent=1 // pred_check_branch
      %50 = sbr.rel (0) target = $region33
    $region32: #{textcnn_forward.1} parent=1 // pred_region
      %51 = dma.done [#allocation6], 6144
    $region33: #{textcnn_forward.1} parent=1 // pred_fallthru
      _
    %v53 = vld [vmem:[%s0] sm:$0xf]
    %v54 = vld [vmem:[%s0 + $0x4] sm:$0xf]
    %v55 = vld [vmem:[#allocation2] sm:$0xff]
    %v56 = vld [vmem:[#allocation2 + $0x8] sm:$0xff]
    %v57 = vld [vmem:[#allocation2 + $0x10] sm:$0xff]
    %v58 = vld [vmem:[#allocation2 + $0x18] sm:$0xff]
    %v59 = vld [vmem:[#allocation2 + $0x20] sm:$0xff]
    %v60 = vld [vmem:[#allocation2 + $0x28] sm:$0xff]
    %v61 = vld [vmem:[#allocation2 + $0x30] sm:$0xff]
    %v62 = vld [vmem:[#allocation2 + $0x38] sm:$0xff]
    %v63 = vld [vmem:[#allocation2 + $0x40] sm:$0xff]
    %v64 = vld [vmem:[#allocation2 + $0x48] sm:$0xff]
    %v65 = vld [vmem:[#allocation2 + $0x50] sm:$0xff]
    %v66 = vld [vmem:[#allocation2 + $0x58] sm:$0xff]
    %v67 = vld [vmem:[#allocation2 + $0x60] sm:$0xff]
    %v68 = vld [vmem:[#allocation2 + $0x68] sm:$0xff]
    %v69 = vld [vmem:[#allocation2 + $0x70] sm:$0xff]
    %v70 = vld [vmem:[#allocation2 + $0x78] sm:$0xff]
    %v71 = vld [vmem:[#allocation2 + $0x80] sm:$0xff]
    %v72 = vld [vmem:[#allocation2 + $0x88] sm:$0xff]
    %v73 = vld [vmem:[#allocation2 + $0x90] sm:$0xff]
    %v74 = vld [vmem:[#allocation2 + $0x98] sm:$0xff]
    %v75 = vld [vmem:[#allocation2 + $0xa0] sm:$0xff]
    %v76 = vld [vmem:[#allocation2 + $0xa8] sm:$0xff]
    %v77 = vld [vmem:[#allocation2 + $0xb0] sm:$0xff]
    %v78 = vld [vmem:[#allocation2 + $0xb8] sm:$0xff]
    %v79 = vld [vmem:[#allocation2 + $0xc0] sm:$0xff]
    %v80 = vld [vmem:[#allocation2 + $0xc8] sm:$0xff]
    %v81 = vld [vmem:[#allocation2 + $0xd0] sm:$0xff]
    %v82 = vld [vmem:[#allocation2 + $0xd8] sm:$0xff]
    %v83 = vld [vmem:[#allocation2 + $0xe0] sm:$0xff]
    %v84 = vld [vmem:[#allocation2 + $0xe8] sm:$0xff]
    %v85 = vld [vmem:[#allocation2 + $0xf0] sm:$0xff]
    %v86 = vld [vmem:[#allocation2 + $0xf8] sm:$0xff]
    %v87 = vld [vmem:[#allocation2 + $0x100] sm:$0xff]
    %v88 = vld [vmem:[#allocation2 + $0x108] sm:$0xff]
    %v89 = vld [vmem:[#allocation2 + $0x110] sm:$0xff]
    %v90 = vld [vmem:[#allocation2 + $0x118] sm:$0xff]
    %v91 = vld [vmem:[#allocation2 + $0x120] sm:$0xff]
    %v92 = vld [vmem:[#allocation2 + $0x128] sm:$0xff]
    %v93 = vld [vmem:[#allocation2 + $0x130] sm:$0xff]
    %v94 = vld [vmem:[#allocation2 + $0x138] sm:$0xff]
    %v95 = vld [vmem:[#allocation2 + $0x140] sm:$0xff]
    %v96 = vld [vmem:[#allocation2 + $0x148] sm:$0xff]
    %v97 = vld [vmem:[#allocation2 + $0x150] sm:$0xff]
    %v98 = vld [vmem:[#allocation2 + $0x158] sm:$0xff]
    %v99 = vld [vmem:[#allocation2 + $0x160] sm:$0xff]
    %v100 = vld [vmem:[#allocation2 + $0x168] sm:$0xff]
    %v101 = vld [vmem:[#allocation2 + $0x170] sm:$0xff]
    %v102 = vld [vmem:[#allocation2 + $0x178] sm:$0xff]
    %v103 = vld [vmem:[%s2] sm:$0x3f]
    %v105 = vlaneseq
    %v106 = vshrl.u32 %v105, 7
    %v107 = vsub.s32 0, %v106
    %v108 = vrot.slane %v103, %v107
    %v109 = vlaneseq
    %v110 = vshrl.u32 %v109, 7
    %v111 = vsub.s32 1, %v110
    %v112 = vrot.slane %v103, %v111
    %v113 = vlaneseq
    %v114 = vshrl.u32 %v113, 7
    %v115 = vsub.s32 2, %v114
    %v116 = vrot.slane %v103, %v115
    %v117 = vlaneseq
    %v118 = vshrl.u32 %v117, 7
    %v119 = vsub.s32 3, %v118
    %v120 = vrot.slane %v103, %v119
    %v121 = vlaneseq
    %v122 = vshrl.u32 %v121, 7
    %v123 = vsub.s32 4, %v122
    %v124 = vrot.slane %v103, %v123
    %v125 = vlaneseq
    %v126 = vshrl.u32 %v125, 7
    %v127 = vsub.s32 5, %v126
    %v128 = vrot.slane %v103, %v127
    %v137 = vunpack.c.l.b16 %v53
    %v138 = vunpack.c.l.b16 %v54
    %v139 = vpack.c.b16 %v138, %v137
    %v189 = vunpack.c.l.b16 %v55
    %v190 = vunpack.c.h.b16 %v55
    %v191 = vunpack.c.l.b16 %v56
    %v192 = vunpack.c.h.b16 %v56
    %v193 = vunpack.c.l.b16 %v57
    %v194 = vunpack.c.h.b16 %v57
    %v195 = vunpack.c.l.b16 %v58
    %v196 = vunpack.c.h.b16 %v58
    %v197 = vunpack.c.l.b16 %v59
    %v198 = vunpack.c.h.b16 %v59
    %v199 = vunpack.c.l.b16 %v60
    %v200 = vunpack.c.h.b16 %v60
    %v201 = vunpack.c.l.b16 %v61
    %v202 = vunpack.c.h.b16 %v61
    %v203 = vunpack.c.l.b16 %v62
    %v204 = vunpack.c.h.b16 %v62
    %v205 = vunpack.c.l.b16 %v63
    %v206 = vunpack.c.h.b16 %v63
    %v207 = vunpack.c.l.b16 %v64
    %v208 = vunpack.c.h.b16 %v64
    %v209 = vunpack.c.l.b16 %v65
    %v210 = vunpack.c.h.b16 %v65
    %v211 = vunpack.c.l.b16 %v66
    %v212 = vunpack.c.h.b16 %v66
    %v213 = vunpack.c.l.b16 %v67
    %v214 = vunpack.c.h.b16 %v67
    %v215 = vunpack.c.l.b16 %v68
    %v216 = vunpack.c.h.b16 %v68
    %v217 = vunpack.c.l.b16 %v69
    %v218 = vunpack.c.h.b16 %v69
    %v219 = vunpack.c.l.b16 %v70
    %v220 = vunpack.c.h.b16 %v70
    %v221 = vunpack.c.l.b16 %v71
    %v222 = vunpack.c.h.b16 %v71
    %v223 = vunpack.c.l.b16 %v72
    %v224 = vunpack.c.h.b16 %v72
    %v225 = vunpack.c.l.b16 %v73
    %v226 = vunpack.c.h.b16 %v73
    %v227 = vunpack.c.l.b16 %v74
    %v228 = vunpack.c.h.b16 %v74
    %v229 = vunpack.c.l.b16 %v75
    %v230 = vunpack.c.h.b16 %v75
    %v231 = vunpack.c.l.b16 %v76
    %v232 = vunpack.c.h.b16 %v76
    %v233 = vunpack.c.l.b16 %v77
    %v234 = vunpack.c.h.b16 %v77
    %v235 = vunpack.c.l.b16 %v78
    %v236 = vunpack.c.h.b16 %v78
    %v237 = vunpack.c.l.b16 %v79
    %v238 = vunpack.c.h.b16 %v79
    %v239 = vunpack.c.l.b16 %v80
    %v240 = vunpack.c.h.b16 %v80
    %v241 = vunpack.c.l.b16 %v81
    %v242 = vunpack.c.h.b16 %v81
    %v243 = vunpack.c.l.b16 %v82
    %v244 = vunpack.c.h.b16 %v82
    %v245 = vunpack.c.l.b16 %v83
    %v246 = vunpack.c.h.b16 %v83
    %v247 = vunpack.c.l.b16 %v84
    %v248 = vunpack.c.h.b16 %v84
    %v249 = vunpack.c.l.b16 %v85
    %v250 = vunpack.c.h.b16 %v85
    %v251 = vunpack.c.l.b16 %v86
    %v252 = vunpack.c.h.b16 %v86
    %v253 = vunpack.c.l.b16 %v87
    %v254 = vunpack.c.h.b16 %v87
    %v255 = vunpack.c.l.b16 %v88
    %v256 = vunpack.c.h.b16 %v88
    %v257 = vunpack.c.l.b16 %v89
    %v258 = vunpack.c.h.b16 %v89
    %v259 = vunpack.c.l.b16 %v90
    %v260 = vunpack.c.h.b16 %v90
    %v261 = vunpack.c.l.b16 %v91
    %v262 = vunpack.c.h.b16 %v91
    %v263 = vunpack.c.l.b16 %v92
    %v264 = vunpack.c.h.b16 %v92
    %v265 = vunpack.c.l.b16 %v93
    %v266 = vunpack.c.h.b16 %v93
    %v267 = vunpack.c.l.b16 %v94
    %v268 = vunpack.c.h.b16 %v94
    %v269 = vunpack.c.l.b16 %v95
    %v270 = vunpack.c.h.b16 %v95
    %v271 = vunpack.c.l.b16 %v96
    %v272 = vunpack.c.h.b16 %v96
    %v273 = vunpack.c.l.b16 %v97
    %v274 = vunpack.c.h.b16 %v97
    %v275 = vunpack.c.l.b16 %v98
    %v276 = vunpack.c.h.b16 %v98
    %v277 = vunpack.c.l.b16 %v99
    %v278 = vunpack.c.h.b16 %v99
    %v279 = vunpack.c.l.b16 %v100
    %v280 = vunpack.c.h.b16 %v100
    %v281 = vunpack.c.l.b16 %v101
    %v282 = vunpack.c.h.b16 %v101
    %v283 = vunpack.c.l.b16 %v102
    %v284 = vunpack.c.h.b16 %v102
    %v285 = vpack.c.b16 %v195, %v189
    %v286 = vpack.c.b16 %v196, %v190
    %v287 = vpack.c.b16 %v197, %v191
    %v288 = vpack.c.b16 %v198, %v192
    %v289 = vpack.c.b16 %v199, %v193
    %v290 = vpack.c.b16 %v200, %v194
    %v291 = vpack.c.b16 %v207, %v201
    %v292 = vpack.c.b16 %v208, %v202
    %v293 = vpack.c.b16 %v209, %v203
    %v294 = vpack.c.b16 %v210, %v204
    %v295 = vpack.c.b16 %v211, %v205
    %v296 = vpack.c.b16 %v212, %v206
    %v297 = vpack.c.b16 %v219, %v213
    %v298 = vpack.c.b16 %v220, %v214
    %v299 = vpack.c.b16 %v221, %v215
    %v300 = vpack.c.b16 %v222, %v216
    %v301 = vpack.c.b16 %v223, %v217
    %v302 = vpack.c.b16 %v224, %v218
    %v303 = vpack.c.b16 %v231, %v225
    %v304 = vpack.c.b16 %v232, %v226
    %v305 = vpack.c.b16 %v233, %v227
    %v306 = vpack.c.b16 %v234, %v228
    %v307 = vpack.c.b16 %v235, %v229
    %v308 = vpack.c.b16 %v236, %v230
    %v309 = vpack.c.b16 %v243, %v237
    %v310 = vpack.c.b16 %v244, %v238
    %v311 = vpack.c.b16 %v245, %v239
    %v312 = vpack.c.b16 %v246, %v240
    %v313 = vpack.c.b16 %v247, %v241
    %v314 = vpack.c.b16 %v248, %v242
    %v315 = vpack.c.b16 %v255, %v249
    %v316 = vpack.c.b16 %v256, %v250
    %v317 = vpack.c.b16 %v257, %v251
    %v318 = vpack.c.b16 %v258, %v252
    %v319 = vpack.c.b16 %v259, %v253
    %v320 = vpack.c.b16 %v260, %v254
    %v321 = vpack.c.b16 %v267, %v261
    %v322 = vpack.c.b16 %v268, %v262
    %v323 = vpack.c.b16 %v269, %v263
    %v324 = vpack.c.b16 %v270, %v264
    %v325 = vpack.c.b16 %v271, %v265
    %v326 = vpack.c.b16 %v272, %v266
    %v327 = vpack.c.b16 %v279, %v273
    %v328 = vpack.c.b16 %v280, %v274
    %v329 = vpack.c.b16 %v281, %v275
    %v330 = vpack.c.b16 %v282, %v276
    %v331 = vpack.c.b16 %v283, %v277
    %v332 = vpack.c.b16 %v284, %v278
    %381 = vmatprep.subr.bf16.mxu0 %v328
    %382 = vmatpush1.bf16.msra.mxu0 %v327
    %383 = vmatprep.subr.bf16.mxu0 %v322
    %384 = vmatpush1.bf16.msra.mxu0 %v321
    %385 = vmatprep.subr.bf16.mxu0 %v316
    %386 = vmatpush1.bf16.msra.mxu0 %v315
    %387 = vmatprep.subr.bf16.mxu0 %v310
    %388 = vmatpush1.bf16.msra.mxu0 %v309
    %389 = vmatprep.subr.bf16.mxu0 %v304
    %390 = vmatpush1.bf16.msra.mxu0 %v303
    %391 = vmatprep.subr.bf16.mxu0 %v298
    %392 = vmatpush1.bf16.msra.mxu0 %v297
    %393 = vmatprep.subr.bf16.mxu0 %v292
    %394 = vmatpush1.bf16.msra.mxu0 %v291
    %395 = vmatprep.subr.bf16.mxu0 %v286
    %396 = vmatpush1.bf16.msra.mxu0 %v285
    %397 = vmatprep.subr.bf16.mxu0 0
    %398 = vmatpush2.bf16.msra.mxu0 0
    %399 = vmatprep.subr.bf16.mxu0 0
    %400 = vmatpush2.bf16.msra.mxu0 0
    %401 = vmatprep.subr.bf16.mxu0 0
    %402 = vmatpush2.bf16.msra.mxu0 0
    %403 = vmatprep.subr.bf16.mxu0 0
    %404 = vmatpush2.bf16.msra.mxu0 0
    %405 = vmatprep.subr.bf16.mxu0 0
    %406 = vmatpush2.bf16.msra.mxu0 0
    %407 = vmatprep.subr.bf16.mxu0 0
    %408 = vmatpush2.bf16.msra.mxu0 0
    %409 = vmatprep.subr.bf16.mxu0 0
    %410 = vmatpush2.bf16.msra.mxu0 0
    %411 = vmatprep.subr.bf16.mxu0 0
    %412 = vmatpush2.bf16.msra.mxu0 0
    %413 = vmatprep.mubr.bf16.mxu0 0
    %414 = vmatmul.mubr.bf16.gmra.mxu0 %v139
    %v415 = vpop.f32.mrf.mxu0
    %v416 = vadd.f32 %v108, %v415
    %v417 = vpop.f32.mrf.mxu0
    %v418 = vadd.f32 %v112, %v417
    %v419 = vpop.f32.mrf.mxu0
    %v420 = vadd.f32 %v108, %v419
    %v421 = vpop.f32.mrf.mxu0
    %v422 = vadd.f32 %v112, %v421
    %423 = vdwg.mxu0
    %424 = vmatprep.subr.bf16.mxu0 %v330
    %425 = vmatpush1.bf16.msra.mxu0 %v329
    %426 = vmatprep.subr.bf16.mxu0 %v324
    %427 = vmatpush1.bf16.msra.mxu0 %v323
    %428 = vmatprep.subr.bf16.mxu0 %v318
    %429 = vmatpush1.bf16.msra.mxu0 %v317
    %430 = vmatprep.subr.bf16.mxu0 %v312
    %431 = vmatpush1.bf16.msra.mxu0 %v311
    %432 = vmatprep.subr.bf16.mxu0 %v306
    %433 = vmatpush1.bf16.msra.mxu0 %v305
    %434 = vmatprep.subr.bf16.mxu0 %v300
    %435 = vmatpush1.bf16.msra.mxu0 %v299
    %436 = vmatprep.subr.bf16.mxu0 %v294
    %437 = vmatpush1.bf16.msra.mxu0 %v293
    %438 = vmatprep.subr.bf16.mxu0 %v288
    %439 = vmatpush1.bf16.msra.mxu0 %v287
    %440 = vmatprep.subr.bf16.mxu0 0
    %441 = vmatpush2.bf16.msra.mxu0 0
    %442 = vmatprep.subr.bf16.mxu0 0
    %443 = vmatpush2.bf16.msra.mxu0 0
    %444 = vmatprep.subr.bf16.mxu0 0
    %445 = vmatpush2.bf16.msra.mxu0 0
    %446 = vmatprep.subr.bf16.mxu0 0
    %447 = vmatpush2.bf16.msra.mxu0 0
    %448 = vmatprep.subr.bf16.mxu0 0
    %449 = vmatpush2.bf16.msra.mxu0 0
    %450 = vmatprep.subr.bf16.mxu0 0
    %451 = vmatpush2.bf16.msra.mxu0 0
    %452 = vmatprep.subr.bf16.mxu0 0
    %453 = vmatpush2.bf16.msra.mxu0 0
    %454 = vmatprep.subr.bf16.mxu0 0
    %455 = vmatpush2.bf16.msra.mxu0 0
    %456 = vmatprep.mubr.bf16.mxu0 0
    %457 = vmatmul.mubr.bf16.gmra.mxu0 %v139
    %v458 = vpop.f32.mrf.mxu0
    %v459 = vadd.f32 %v116, %v458
    %v460 = vpop.f32.mrf.mxu0
    %v461 = vadd.f32 %v120, %v460
    %v462 = vpop.f32.mrf.mxu0
    %v463 = vadd.f32 %v116, %v462
    %v464 = vpop.f32.mrf.mxu0
    %v465 = vadd.f32 %v120, %v464
    %466 = vdwg.mxu0
    %467 = vmatprep.subr.bf16.mxu0 %v332
    %468 = vmatpush1.bf16.msra.mxu0 %v331
    %469 = vmatprep.subr.bf16.mxu0 %v326
    %470 = vmatpush1.bf16.msra.mxu0 %v325
    %471 = vmatprep.subr.bf16.mxu0 %v320
    %472 = vmatpush1.bf16.msra.mxu0 %v319
    %473 = vmatprep.subr.bf16.mxu0 %v314
    %474 = vmatpush1.bf16.msra.mxu0 %v313
    %475 = vmatprep.subr.bf16.mxu0 %v308
    %476 = vmatpush1.bf16.msra.mxu0 %v307
    %477 = vmatprep.subr.bf16.mxu0 %v302
    %478 = vmatpush1.bf16.msra.mxu0 %v301
    %479 = vmatprep.subr.bf16.mxu0 %v296
    %480 = vmatpush1.bf16.msra.mxu0 %v295
    %481 = vmatprep.subr.bf16.mxu0 %v290
    %482 = vmatpush1.bf16.msra.mxu0 %v289
    %483 = vmatprep.subr.bf16.mxu0 0
    %484 = vmatpush2.bf16.msra.mxu0 0
    %485 = vmatprep.subr.bf16.mxu0 0
    %486 = vmatpush2.bf16.msra.mxu0 0
    %487 = vmatprep.subr.bf16.mxu0 0
    %488 = vmatpush2.bf16.msra.mxu0 0
    %489 = vmatprep.subr.bf16.mxu0 0
    %490 = vmatpush2.bf16.msra.mxu0 0
    %491 = vmatprep.subr.bf16.mxu0 0
    %492 = vmatpush2.bf16.msra.mxu0 0
    %493 = vmatprep.subr.bf16.mxu0 0
    %494 = vmatpush2.bf16.msra.mxu0 0
    %495 = vmatprep.subr.bf16.mxu0 0
    %496 = vmatpush2.bf16.msra.mxu0 0
    %497 = vmatprep.subr.bf16.mxu0 0
    %498 = vmatpush2.bf16.msra.mxu0 0
    %499 = vmatprep.mubr.bf16.mxu0 0
    %500 = vmatmul.mubr.bf16.gmra.mxu0 %v139
    %v501 = vpop.f32.mrf.mxu0
    %v502 = vadd.f32 %v124, %v501
    %v503 = vpop.f32.mrf.mxu0
    %v504 = vadd.f32 %v128, %v503
    %v505 = vpop.f32.mrf.mxu0
    %v506 = vadd.f32 %v124, %v505
    %v507 = vpop.f32.mrf.mxu0
    %v508 = vadd.f32 %v128, %v507
    %509 = vdwg.mxu0
    %v510 = vmax.f32 %v416, 0.0
    %v511 = vmax.f32 %v418, 0.0
    %v512 = vmax.f32 %v459, 0.0
    %v513 = vmax.f32 %v461, 0.0
    %v514 = vmax.f32 %v502, 0.0
    %v515 = vmax.f32 %v504, 0.0
    %v516 = vmax.f32 %v420, 0.0
    %v517 = vmax.f32 %v422, 0.0
    %v518 = vmax.f32 %v463, 0.0
    %v519 = vmax.f32 %v465, 0.0
    %v520 = vmax.f32 %v506, 0.0
    %v521 = vmax.f32 %v508, 0.0
    %v522 = vld [vmem:[%s3] sm:$0xff]
    %v523 = vld [vmem:[%s3 + $0x8] sm:$0xff]
    %v524 = vld [vmem:[%s3 + $0x10] sm:$0xff]
    %v525 = vld [vmem:[%s3 + $0x18] sm:$0xff]
    %v526 = vld [vmem:[%s3 + $0x20] sm:$0xff]
    %v527 = vld [vmem:[%s3 + $0x28] sm:$0xff]
    %v528 = vmul.f32 %v510, %v522
    %v529 = vmul.f32 %v511, %v523
    %v530 = vmul.f32 %v512, %v524
    %v531 = vmul.f32 %v513, %v525
    %v532 = vmul.f32 %v514, %v526
    %v533 = vmul.f32 %v515, %v527
    %v534 = vmul.f32 %v516, %v522
    %v535 = vmul.f32 %v517, %v523
    %v536 = vmul.f32 %v518, %v524
    %v537 = vmul.f32 %v519, %v525
    %v538 = vmul.f32 %v520, %v526
    %v539 = vmul.f32 %v521, %v527
    %v540 = vrot.slane %v528, 4
    %v541 = vmax.f32 %v528, %v540
    %v542 = vrot.slane %v541, 2
    %v543 = vmax.f32 %v541, %v542
    %v544 = vrot.slane %v543, 1
    %v545 = vmax.f32 %v543, %v544
    %v546 = vrot.slane %v529, 4
    %v547 = vmax.f32 %v529, %v546
    %v548 = vrot.slane %v547, 2
    %v549 = vmax.f32 %v547, %v548
    %v550 = vrot.slane %v549, 1
    %v551 = vmax.f32 %v549, %v550
    %v552 = vrot.slane %v530, 4
    %v553 = vmax.f32 %v530, %v552
    %v554 = vrot.slane %v553, 2
    %v555 = vmax.f32 %v553, %v554
    %v556 = vrot.slane %v555, 1
    %v557 = vmax.f32 %v555, %v556
    %v558 = vrot.slane %v531, 4
    %v559 = vmax.f32 %v531, %v558
    %v560 = vrot.slane %v559, 2
    %v561 = vmax.f32 %v559, %v560
    %v562 = vrot.slane %v561, 1
    %v563 = vmax.f32 %v561, %v562
    %v564 = vrot.slane %v532, 4
    %v565 = vmax.f32 %v532, %v564
    %v566 = vrot.slane %v565, 2
    %v567 = vmax.f32 %v565, %v566
    %v568 = vrot.slane %v567, 1
    %v569 = vmax.f32 %v567, %v568
    %v570 = vrot.slane %v533, 4
    %v571 = vmax.f32 %v533, %v570
    %v572 = vrot.slane %v571, 2
    %v573 = vmax.f32 %v571, %v572
    %v574 = vrot.slane %v573, 1
    %v575 = vmax.f32 %v573, %v574
    %v576 = vrot.slane %v534, 4
    %v577 = vmax.f32 %v534, %v576
    %v578 = vrot.slane %v577, 2
    %v579 = vmax.f32 %v577, %v578
    %v580 = vrot.slane %v579, 1
    %v581 = vmax.f32 %v579, %v580
    %v582 = vrot.slane %v535, 4
    %v583 = vmax.f32 %v535, %v582
    %v584 = vrot.slane %v583, 2
    %v585 = vmax.f32 %v583, %v584
    %v586 = vrot.slane %v585, 1
    %v587 = vmax.f32 %v585, %v586
    %v588 = vrot.slane %v536, 4
    %v589 = vmax.f32 %v536, %v588
    %v590 = vrot.slane %v589, 2
    %v591 = vmax.f32 %v589, %v590
    %v592 = vrot.slane %v591, 1
    %v593 = vmax.f32 %v591, %v592
    %v594 = vrot.slane %v537, 4
    %v595 = vmax.f32 %v537, %v594
    %v596 = vrot.slane %v595, 2
    %v597 = vmax.f32 %v595, %v596
    %v598 = vrot.slane %v597, 1
    %v599 = vmax.f32 %v597, %v598
    %v600 = vrot.slane %v538, 4
    %v601 = vmax.f32 %v538, %v600
    %v602 = vrot.slane %v601, 2
    %v603 = vmax.f32 %v601, %v602
    %v604 = vrot.slane %v603, 1
    %v605 = vmax.f32 %v603, %v604
    %v606 = vrot.slane %v539, 4
    %v607 = vmax.f32 %v539, %v606
    %v608 = vrot.slane %v607, 2
    %v609 = vmax.f32 %v607, %v608
    %v610 = vrot.slane %v609, 1
    %v611 = vmax.f32 %v609, %v610
    %v612 = vpack.c.bf16 %v545, %v545
    %v613 = vpack.c.bf16 %v551, %v551
    %v614 = vpack.c.bf16 %v557, %v557
    %v615 = vpack.c.bf16 %v563, %v563
    %v616 = vpack.c.bf16 %v569, %v569
    %v617 = vpack.c.bf16 %v575, %v575
    %v618 = vpack.c.bf16 %v581, %v581
    %v619 = vpack.c.bf16 %v587, %v587
    %v620 = vpack.c.bf16 %v593, %v593
    %v621 = vpack.c.bf16 %v599, %v599
    %v622 = vpack.c.bf16 %v605, %v605
    %v623 = vpack.c.bf16 %v611, %v611
    %v624 = vld [vmem:[#allocation5] sm:$0xf]
    %v625 = vld [vmem:[#allocation5 + $0x4] sm:$0xf]
    %v626 = vld [vmem:[#allocation5 + $0x8] sm:$0xf]
    %v627 = vld [vmem:[#allocation5 + $0xc] sm:$0xf]
    %v628 = vld [vmem:[#allocation5 + $0x10] sm:$0xf]
    %v629 = vld [vmem:[#allocation5 + $0x14] sm:$0xf]
    %v630 = vld [vmem:[#allocation5 + $0x18] sm:$0xf]
    %v631 = vld [vmem:[#allocation5 + $0x1c] sm:$0xf]
    %v632 = vld [vmem:[#allocation5 + $0x20] sm:$0xf]
    %v633 = vld [vmem:[#allocation5 + $0x24] sm:$0xf]
    %v634 = vld [vmem:[#allocation5 + $0x28] sm:$0xf]
    %v635 = vld [vmem:[#allocation5 + $0x2c] sm:$0xf]
    %v636 = vld [vmem:[#allocation5 + $0x30] sm:$0xf]
    %v637 = vld [vmem:[#allocation5 + $0x34] sm:$0xf]
    %v638 = vld [vmem:[#allocation5 + $0x38] sm:$0xf]
    %v639 = vld [vmem:[#allocation5 + $0x3c] sm:$0xf]
    %v640 = vld [vmem:[#allocation5 + $0x40] sm:$0xf]
    %v641 = vld [vmem:[#allocation5 + $0x44] sm:$0xf]
    %v642 = vld [vmem:[#allocation5 + $0x48] sm:$0xf]
    %v643 = vld [vmem:[#allocation5 + $0x4c] sm:$0xf]
    %v644 = vld [vmem:[#allocation5 + $0x50] sm:$0xf]
    %v645 = vld [vmem:[#allocation5 + $0x54] sm:$0xf]
    %v646 = vld [vmem:[#allocation5 + $0x58] sm:$0xf]
    %v647 = vld [vmem:[#allocation5 + $0x5c] sm:$0xf]
    %v648 = vld [vmem:[#allocation5 + $0x60] sm:$0xf]
    %v649 = vld [vmem:[#allocation5 + $0x64] sm:$0xf]
    %v650 = vld [vmem:[#allocation5 + $0x68] sm:$0xf]
    %v651 = vld [vmem:[#allocation5 + $0x6c] sm:$0xf]
    %v652 = vld [vmem:[#allocation5 + $0x70] sm:$0xf]
    %v653 = vld [vmem:[#allocation5 + $0x74] sm:$0xf]
    %v654 = vld [vmem:[#allocation5 + $0x78] sm:$0xf]
    %v655 = vld [vmem:[#allocation5 + $0x7c] sm:$0xf]
    %v656 = vld [vmem:[#allocation5 + $0x80] sm:$0xf]
    %v657 = vld [vmem:[#allocation5 + $0x84] sm:$0xf]
    %v658 = vld [vmem:[#allocation5 + $0x88] sm:$0xf]
    %v659 = vld [vmem:[#allocation5 + $0x8c] sm:$0xf]
    %v660 = vld [vmem:[#allocation5 + $0x90] sm:$0xf]
    %v661 = vld [vmem:[#allocation5 + $0x94] sm:$0xf]
    %v662 = vld [vmem:[#allocation5 + $0x98] sm:$0xf]
    %v663 = vld [vmem:[#allocation5 + $0x9c] sm:$0xf]
    %v664 = vld [vmem:[#allocation5 + $0xa0] sm:$0xf]
    %v665 = vld [vmem:[#allocation5 + $0xa4] sm:$0xf]
    %v666 = vld [vmem:[#allocation5 + $0xa8] sm:$0xf]
    %v667 = vld [vmem:[#allocation5 + $0xac] sm:$0xf]
    %v668 = vld [vmem:[#allocation5 + $0xb0] sm:$0xf]
    %v669 = vld [vmem:[#allocation5 + $0xb4] sm:$0xf]
    %v670 = vld [vmem:[#allocation5 + $0xb8] sm:$0xf]
    %v671 = vld [vmem:[#allocation5 + $0xbc] sm:$0xf]
    %v672 = vld [vmem:[#allocation5 + $0xc0] sm:$0xf]
    %v673 = vld [vmem:[#allocation5 + $0xc4] sm:$0xf]
    %v674 = vld [vmem:[#allocation5 + $0xc8] sm:$0xf]
    %v675 = vld [vmem:[#allocation5 + $0xcc] sm:$0xf]
    %v676 = vld [vmem:[#allocation5 + $0xd0] sm:$0xf]
    %v677 = vld [vmem:[#allocation5 + $0xd4] sm:$0xf]
    %v678 = vld [vmem:[#allocation5 + $0xd8] sm:$0xf]
    %v679 = vld [vmem:[#allocation5 + $0xdc] sm:$0xf]
    %v680 = vld [vmem:[#allocation5 + $0xe0] sm:$0xf]
    %v681 = vld [vmem:[#allocation5 + $0xe4] sm:$0xf]
    %v682 = vld [vmem:[#allocation5 + $0xe8] sm:$0xf]
    %v683 = vld [vmem:[#allocation5 + $0xec] sm:$0xf]
    %v684 = vld [vmem:[#allocation5 + $0xf0] sm:$0xf]
    %v685 = vld [vmem:[#allocation5 + $0xf4] sm:$0xf]
    %v686 = vld [vmem:[#allocation5 + $0xf8] sm:$0xf]
    %v687 = vld [vmem:[#allocation5 + $0xfc] sm:$0xf]
    %v688 = vld [vmem:[#allocation5 + $0x100] sm:$0xf]
    %v689 = vld [vmem:[#allocation5 + $0x104] sm:$0xf]
    %v690 = vld [vmem:[#allocation5 + $0x108] sm:$0xf]
    %v691 = vld [vmem:[#allocation5 + $0x10c] sm:$0xf]
    %v692 = vld [vmem:[#allocation5 + $0x110] sm:$0xf]
    %v693 = vld [vmem:[#allocation5 + $0x114] sm:$0xf]
    %v694 = vld [vmem:[#allocation5 + $0x118] sm:$0xf]
    %v695 = vld [vmem:[#allocation5 + $0x11c] sm:$0xf]
    %v696 = vld [vmem:[#allocation5 + $0x120] sm:$0xf]
    %v697 = vld [vmem:[#allocation5 + $0x124] sm:$0xf]
    %v698 = vld [vmem:[#allocation5 + $0x128] sm:$0xf]
    %v699 = vld [vmem:[#allocation5 + $0x12c] sm:$0xf]
    %v700 = vld [vmem:[#allocation5 + $0x130] sm:$0xf]
    %v701 = vld [vmem:[#allocation5 + $0x134] sm:$0xf]
    %v702 = vld [vmem:[#allocation5 + $0x138] sm:$0xf]
    %v703 = vld [vmem:[#allocation5 + $0x13c] sm:$0xf]
    %v704 = vld [vmem:[#allocation5 + $0x140] sm:$0xf]
    %v705 = vld [vmem:[#allocation5 + $0x144] sm:$0xf]
    %v706 = vld [vmem:[#allocation5 + $0x148] sm:$0xf]
    %v707 = vld [vmem:[#allocation5 + $0x14c] sm:$0xf]
    %v708 = vld [vmem:[#allocation5 + $0x150] sm:$0xf]
    %v709 = vld [vmem:[#allocation5 + $0x154] sm:$0xf]
    %v710 = vld [vmem:[#allocation5 + $0x158] sm:$0xf]
    %v711 = vld [vmem:[#allocation5 + $0x15c] sm:$0xf]
    %v712 = vld [vmem:[#allocation5 + $0x160] sm:$0xf]
    %v713 = vld [vmem:[#allocation5 + $0x164] sm:$0xf]
    %v714 = vld [vmem:[#allocation5 + $0x168] sm:$0xf]
    %v715 = vld [vmem:[#allocation5 + $0x16c] sm:$0xf]
    %v716 = vld [vmem:[#allocation5 + $0x170] sm:$0xf]
    %v717 = vld [vmem:[#allocation5 + $0x174] sm:$0xf]
    %v718 = vld [vmem:[#allocation5 + $0x178] sm:$0xf]
    %v719 = vld [vmem:[#allocation5 + $0x17c] sm:$0xf]
    %v720 = vld [vmem:[%s5] sm:$0x1]
    %v722 = vlaneseq
    %v723 = vshrl.u32 %v722, 7
    %v724 = vsub.s32 0, %v723
    %v725 = vrot.slane %v720, %v724
    %v739 = vunpack.c.l.b16 %v612
    %v740 = vunpack.c.l.b16 %v613
    %v741 = vunpack.c.l.b16 %v614
    %v742 = vunpack.c.l.b16 %v615
    %v743 = vunpack.c.l.b16 %v616
    %v744 = vunpack.c.l.b16 %v617
    %v745 = vunpack.c.l.b16 %v618
    %v746 = vunpack.c.l.b16 %v619
    %v747 = vunpack.c.l.b16 %v620
    %v748 = vunpack.c.l.b16 %v621
    %v749 = vunpack.c.l.b16 %v622
    %v750 = vunpack.c.l.b16 %v623
    %vm751 = vcmask 1041409
    %v752 = vsel %vm751, %v745, %v739
    %v753 = vsel %vm751, %v746, %v740
    %v754 = vsel %vm751, %v747, %v741
    %v755 = vsel %vm751, %v748, %v742
    %v756 = vsel %vm751, %v749, %v743
    %v757 = vsel %vm751, %v750, %v744
    %v758 = vpack.c.b16 %v752, %v752
    %v759 = vpack.c.b16 %v753, %v753
    %v760 = vpack.c.b16 %v754, %v754
    %v761 = vpack.c.b16 %v755, %v755
    %v762 = vpack.c.b16 %v756, %v756
    %v763 = vpack.c.b16 %v757, %v757
    %v866 = vunpack.c.l.b16 %v624
    %v867 = vunpack.c.l.b16 %v625
    %v868 = vunpack.c.l.b16 %v626
    %v869 = vunpack.c.l.b16 %v627
    %v870 = vunpack.c.l.b16 %v628
    %v871 = vunpack.c.l.b16 %v629
    %v872 = vunpack.c.l.b16 %v630
    %v873 = vunpack.c.l.b16 %v631
    %v874 = vunpack.c.l.b16 %v632
    %v875 = vunpack.c.l.b16 %v633
    %v876 = vunpack.c.l.b16 %v634
    %v877 = vunpack.c.l.b16 %v635
    %v878 = vunpack.c.l.b16 %v636
    %v879 = vunpack.c.l.b16 %v637
    %v880 = vunpack.c.l.b16 %v638
    %v881 = vunpack.c.l.b16 %v639
    %v882 = vunpack.c.l.b16 %v640
    %v883 = vunpack.c.l.b16 %v641
    %v884 = vunpack.c.l.b16 %v642
    %v885 = vunpack.c.l.b16 %v643
    %v886 = vunpack.c.l.b16 %v644
    %v887 = vunpack.c.l.b16 %v645
    %v888 = vunpack.c.l.b16 %v646
    %v889 = vunpack.c.l.b16 %v647
    %v890 = vunpack.c.l.b16 %v648
    %v891 = vunpack.c.l.b16 %v649
    %v892 = vunpack.c.l.b16 %v650
    %v893 = vunpack.c.l.b16 %v651
    %v894 = vunpack.c.l.b16 %v652
    %v895 = vunpack.c.l.b16 %v653
    %v896 = vunpack.c.l.b16 %v654
    %v897 = vunpack.c.l.b16 %v655
    %v898 = vunpack.c.l.b16 %v656
    %v899 = vunpack.c.l.b16 %v657
    %v900 = vunpack.c.l.b16 %v658
    %v901 = vunpack.c.l.b16 %v659
    %v902 = vunpack.c.l.b16 %v660
    %v903 = vunpack.c.l.b16 %v661
    %v904 = vunpack.c.l.b16 %v662
    %v905 = vunpack.c.l.b16 %v663
    %v906 = vunpack.c.l.b16 %v664
    %v907 = vunpack.c.l.b16 %v665
    %v908 = vunpack.c.l.b16 %v666
    %v909 = vunpack.c.l.b16 %v667
    %v910 = vunpack.c.l.b16 %v668
    %v911 = vunpack.c.l.b16 %v669
    %v912 = vunpack.c.l.b16 %v670
    %v913 = vunpack.c.l.b16 %v671
    %v914 = vunpack.c.l.b16 %v672
    %v915 = vunpack.c.l.b16 %v673
    %v916 = vunpack.c.l.b16 %v674
    %v917 = vunpack.c.l.b16 %v675
    %v918 = vunpack.c.l.b16 %v676
    %v919 = vunpack.c.l.b16 %v677
    %v920 = vunpack.c.l.b16 %v678
    %v921 = vunpack.c.l.b16 %v679
    %v922 = vunpack.c.l.b16 %v680
    %v923 = vunpack.c.l.b16 %v681
    %v924 = vunpack.c.l.b16 %v682
    %v925 = vunpack.c.l.b16 %v683
    %v926 = vunpack.c.l.b16 %v684
    %v927 = vunpack.c.l.b16 %v685
    %v928 = vunpack.c.l.b16 %v686
    %v929 = vunpack.c.l.b16 %v687
    %v930 = vunpack.c.l.b16 %v688
    %v931 = vunpack.c.l.b16 %v689
    %v932 = vunpack.c.l.b16 %v690
    %v933 = vunpack.c.l.b16 %v691
    %v934 = vunpack.c.l.b16 %v692
    %v935 = vunpack.c.l.b16 %v693
    %v936 = vunpack.c.l.b16 %v694
    %v937 = vunpack.c.l.b16 %v695
    %v938 = vunpack.c.l.b16 %v696
    %v939 = vunpack.c.l.b16 %v697
    %v940 = vunpack.c.l.b16 %v698
    %v941 = vunpack.c.l.b16 %v699
    %v942 = vunpack.c.l.b16 %v700
    %v943 = vunpack.c.l.b16 %v701
    %v944 = vunpack.c.l.b16 %v702
    %v945 = vunpack.c.l.b16 %v703
    %v946 = vunpack.c.l.b16 %v704
    %v947 = vunpack.c.l.b16 %v705
    %v948 = vunpack.c.l.b16 %v706
    %v949 = vunpack.c.l.b16 %v707
    %v950 = vunpack.c.l.b16 %v708
    %v951 = vunpack.c.l.b16 %v709
    %v952 = vunpack.c.l.b16 %v710
    %v953 = vunpack.c.l.b16 %v711
    %v954 = vunpack.c.l.b16 %v712
    %v955 = vunpack.c.l.b16 %v713
    %v956 = vunpack.c.l.b16 %v714
    %v957 = vunpack.c.l.b16 %v715
    %v958 = vunpack.c.l.b16 %v716
    %v959 = vunpack.c.l.b16 %v717
    %v960 = vunpack.c.l.b16 %v718
    %v961 = vunpack.c.l.b16 %v719
    %v962 = vpack.c.b16 %v867, %v866
    %v963 = vpack.c.b16 %v869, %v868
    %v964 = vpack.c.b16 %v871, %v870
    %v965 = vpack.c.b16 %v873, %v872
    %v966 = vpack.c.b16 %v875, %v874
    %v967 = vpack.c.b16 %v877, %v876
    %v968 = vpack.c.b16 %v879, %v878
    %v969 = vpack.c.b16 %v881, %v880
    %v970 = vpack.c.b16 %v883, %v882
    %v971 = vpack.c.b16 %v885, %v884
    %v972 = vpack.c.b16 %v887, %v886
    %v973 = vpack.c.b16 %v889, %v888
    %v974 = vpack.c.b16 %v891, %v890
    %v975 = vpack.c.b16 %v893, %v892
    %v976 = vpack.c.b16 %v895, %v894
    %v977 = vpack.c.b16 %v897, %v896
    %v978 = vpack.c.b16 %v899, %v898
    %v979 = vpack.c.b16 %v901, %v900
    %v980 = vpack.c.b16 %v903, %v902
    %v981 = vpack.c.b16 %v905, %v904
    %v982 = vpack.c.b16 %v907, %v906
    %v983 = vpack.c.b16 %v909, %v908
    %v984 = vpack.c.b16 %v911, %v910
    %v985 = vpack.c.b16 %v913, %v912
    %v986 = vpack.c.b16 %v915, %v914
    %v987 = vpack.c.b16 %v917, %v916
    %v988 = vpack.c.b16 %v919, %v918
    %v989 = vpack.c.b16 %v921, %v920
    %v990 = vpack.c.b16 %v923, %v922
    %v991 = vpack.c.b16 %v925, %v924
    %v992 = vpack.c.b16 %v927, %v926
    %v993 = vpack.c.b16 %v929, %v928
    %v994 = vpack.c.b16 %v931, %v930
    %v995 = vpack.c.b16 %v933, %v932
    %v996 = vpack.c.b16 %v935, %v934
    %v997 = vpack.c.b16 %v937, %v936
    %v998 = vpack.c.b16 %v939, %v938
    %v999 = vpack.c.b16 %v941, %v940
    %v1000 = vpack.c.b16 %v943, %v942
    %v1001 = vpack.c.b16 %v945, %v944
    %v1002 = vpack.c.b16 %v947, %v946
    %v1003 = vpack.c.b16 %v949, %v948
    %v1004 = vpack.c.b16 %v951, %v950
    %v1005 = vpack.c.b16 %v953, %v952
    %v1006 = vpack.c.b16 %v955, %v954
    %v1007 = vpack.c.b16 %v957, %v956
    %v1008 = vpack.c.b16 %v959, %v958
    %v1009 = vpack.c.b16 %v961, %v960
    %1058 = vmatprep.subr.bf16.mxu0 0
    %1059 = vmatpush1.bf16.msra.mxu0 %v969
    %1060 = vmatprep.subr.bf16.mxu0 0
    %1061 = vmatpush1.bf16.msra.mxu0 %v968
    %1062 = vmatprep.subr.bf16.mxu0 0
    %1063 = vmatpush1.bf16.msra.mxu0 %v967
    %1064 = vmatprep.subr.bf16.mxu0 0
    %1065 = vmatpush1.bf16.msra.mxu0 %v966
    %1066 = vmatprep.subr.bf16.mxu0 0
    %1067 = vmatpush1.bf16.msra.mxu0 %v965
    %1068 = vmatprep.subr.bf16.mxu0 0
    %1069 = vmatpush1.bf16.msra.mxu0 %v964
    %1070 = vmatprep.subr.bf16.mxu0 0
    %1071 = vmatpush1.bf16.msra.mxu0 %v963
    %1072 = vmatprep.subr.bf16.mxu0 0
    %1073 = vmatpush1.bf16.msra.mxu0 %v962
    %1074 = vmatprep.subr.bf16.mxu0 0
    %1075 = vmatpush2.bf16.msra.mxu0 %v977
    %1076 = vmatprep.subr.bf16.mxu0 0
    %1077 = vmatpush2.bf16.msra.mxu0 %v976
    %1078 = vmatprep.subr.bf16.mxu0 0
    %1079 = vmatpush2.bf16.msra.mxu0 %v975
    %1080 = vmatprep.subr.bf16.mxu0 0
    %1081 = vmatpush2.bf16.msra.mxu0 %v974
    %1082 = vmatprep.subr.bf16.mxu0 0
    %1083 = vmatpush2.bf16.msra.mxu0 %v973
    %1084 = vmatprep.subr.bf16.mxu0 0
    %1085 = vmatpush2.bf16.msra.mxu0 %v972
    %1086 = vmatprep.subr.bf16.mxu0 0
    %1087 = vmatpush2.bf16.msra.mxu0 %v971
    %1088 = vmatprep.subr.bf16.mxu0 0
    %1089 = vmatpush2.bf16.msra.mxu0 %v970
    %1090 = vmatprep.mubr.bf16.mxu0 %v759
    %1091 = vmatmul.mubr.bf16.gmra.mxu0 %v758
    %v1092 = vpop.f32.mrf.mxu0
    %v1093 = vadd.f32 %v725, %v1092
    %v1094 = vpop.f32.mrf.mxu0
    %v1095 = vpop.f32.mrf.mxu0
    %v1096 = vpop.f32.mrf.mxu0
    %1097 = vdwg.mxu0
    %1098 = vmatprep.subr.bf16.mxu0 0
    %1099 = vmatpush1.bf16.msra.mxu0 %v985
    %1100 = vmatprep.subr.bf16.mxu0 0
    %1101 = vmatpush1.bf16.msra.mxu0 %v984
    %1102 = vmatprep.subr.bf16.mxu0 0
    %1103 = vmatpush1.bf16.msra.mxu0 %v983
    %1104 = vmatprep.subr.bf16.mxu0 0
    %1105 = vmatpush1.bf16.msra.mxu0 %v982
    %1106 = vmatprep.subr.bf16.mxu0 0
    %1107 = vmatpush1.bf16.msra.mxu0 %v981
    %1108 = vmatprep.subr.bf16.mxu0 0
    %1109 = vmatpush1.bf16.msra.mxu0 %v980
    %1110 = vmatprep.subr.bf16.mxu0 0
    %1111 = vmatpush1.bf16.msra.mxu0 %v979
    %1112 = vmatprep.subr.bf16.mxu0 0
    %1113 = vmatpush1.bf16.msra.mxu0 %v978
    %1114 = vmatprep.subr.bf16.mxu0 0
    %1115 = vmatpush2.bf16.msra.mxu0 %v993
    %1116 = vmatprep.subr.bf16.mxu0 0
    %1117 = vmatpush2.bf16.msra.mxu0 %v992
    %1118 = vmatprep.subr.bf16.mxu0 0
    %1119 = vmatpush2.bf16.msra.mxu0 %v991
    %1120 = vmatprep.subr.bf16.mxu0 0
    %1121 = vmatpush2.bf16.msra.mxu0 %v990
    %1122 = vmatprep.subr.bf16.mxu0 0
    %1123 = vmatpush2.bf16.msra.mxu0 %v989
    %1124 = vmatprep.subr.bf16.mxu0 0
    %1125 = vmatpush2.bf16.msra.mxu0 %v988
    %1126 = vmatprep.subr.bf16.mxu0 0
    %1127 = vmatpush2.bf16.msra.mxu0 %v987
    %1128 = vmatprep.subr.bf16.mxu0 0
    %1129 = vmatpush2.bf16.msra.mxu0 %v986
    %1130 = vmatprep.mubr.bf16.mxu0 %v761
    %1131 = vmatmul.mubr.bf16.gmra.mxu0 %v760
    %v1132 = vpop.f32.mrf.mxu0
    %v1133 = vadd.f32 %v1093, %v1132
    %v1134 = vpop.f32.mrf.mxu0
    %v1135 = vpop.f32.mrf.mxu0
    %v1136 = vpop.f32.mrf.mxu0
    %1137 = vdwg.mxu0
    %1138 = vmatprep.subr.bf16.mxu0 0
    %1139 = vmatpush1.bf16.msra.mxu0 %v1001
    %1140 = vmatprep.subr.bf16.mxu0 0
    %1141 = vmatpush1.bf16.msra.mxu0 %v1000
    %1142 = vmatprep.subr.bf16.mxu0 0
    %1143 = vmatpush1.bf16.msra.mxu0 %v999
    %1144 = vmatprep.subr.bf16.mxu0 0
    %1145 = vmatpush1.bf16.msra.mxu0 %v998
    %1146 = vmatprep.subr.bf16.mxu0 0
    %1147 = vmatpush1.bf16.msra.mxu0 %v997
    %1148 = vmatprep.subr.bf16.mxu0 0
    %1149 = vmatpush1.bf16.msra.mxu0 %v996
    %1150 = vmatprep.subr.bf16.mxu0 0
    %1151 = vmatpush1.bf16.msra.mxu0 %v995
    %1152 = vmatprep.subr.bf16.mxu0 0
    %1153 = vmatpush1.bf16.msra.mxu0 %v994
    %1154 = vmatprep.subr.bf16.mxu0 0
    %1155 = vmatpush2.bf16.msra.mxu0 %v1009
    %1156 = vmatprep.subr.bf16.mxu0 0
    %1157 = vmatpush2.bf16.msra.mxu0 %v1008
    %1158 = vmatprep.subr.bf16.mxu0 0
    %1159 = vmatpush2.bf16.msra.mxu0 %v1007
    %1160 = vmatprep.subr.bf16.mxu0 0
    %1161 = vmatpush2.bf16.msra.mxu0 %v1006
    %1162 = vmatprep.subr.bf16.mxu0 0
    %1163 = vmatpush2.bf16.msra.mxu0 %v1005
    %1164 = vmatprep.subr.bf16.mxu0 0
    %1165 = vmatpush2.bf16.msra.mxu0 %v1004
    %1166 = vmatprep.subr.bf16.mxu0 0
    %1167 = vmatpush2.bf16.msra.mxu0 %v1003
    %1168 = vmatprep.subr.bf16.mxu0 0
    %1169 = vmatpush2.bf16.msra.mxu0 %v1002
    %1170 = vmatprep.mubr.bf16.mxu0 %v763
    %1171 = vmatmul.mubr.bf16.gmra.mxu0 %v762
    %v1172 = vpop.f32.mrf.mxu0
    %v1173 = vadd.f32 %v1133, %v1172
    %v1174 = vpop.f32.mrf.mxu0
    %v1175 = vpop.f32.mrf.mxu0
    %v1176 = vpop.f32.mrf.mxu0
    %1177 = vdwg.mxu0
    %1178 = vst [vmem:[#allocation7] sm:$0x3] %v1173
    // Predicated region
    $region34: #{textcnn_forward.1} parent=1 // pred_check
      _
    $region35: #{textcnn_forward.1} parent=1 // pred_check_branch
      %1180 = sbr.rel (0) target = $region37
    $region36: #{textcnn_forward.1} parent=1 // pred_region
      %s1182 = ssub.s32 32, 32
      %1183 = vsyncadd [#allocation4], %s1182
      %s1185 = sshll.u32 [#allocation7], 4
      %s1186 = int_to_ptr.vmem [resolvable:$true] %s1185
      %1188 = dma.vmem_to_hbm [thread:$0]  %s1186, 32, %s6, [#allocation4]
    $region37: #{textcnn_forward.1} parent=1 // pred_fallthru
      _
    // Predicated region
    $region38: #{textcnn_forward.1} parent=1 // pred_check
      _
    $region39: #{textcnn_forward.1} parent=1 // pred_check_branch
      %1190 = sbr.rel (0) target = $region41
    $region40: #{textcnn_forward.1} parent=1 // pred_region
      %1191 = dma.done [#allocation4], 32
    $region41: #{textcnn_forward.1} parent=1 // pred_fallthru
      _
    %1192 = vsyncpa [#allocation3], 1
    %1193 = vsyncpa [#allocation6], 1
    %1194 = vsyncpa [#allocation4], 1

</llo_original>
